<compile_context>
chip_gen: v7x
topology: tpu7x:2x2x1
jax: 0.10.0
libtpu: 0.0.40
codegen_flags: <defaults>
</compile_context>

<pallas_src>
import jax
import jax.numpy as jnp
import numpy as np
from jax.experimental import pallas as pl
from jax.experimental.pallas import tpu as pltpu

_EPS = 1e-5  # BatchNorm1d default


def _make_conv_kernel(C_in, L):
    """Grouped conv (k=3, 'same') as one block-diagonal matmul + BN-stat accumulation."""

    def kernel(x_ref, w_ref, y_ref, ssum_ref, ssq_ref, xs_ref):
        x = x_ref[0]  # (C_in, L) f32

        # 'same' padding handled in-register: shift with the XLU (pltpu.roll) and zero the
        # wrapped boundary column with an iota mask.
        col = jax.lax.broadcasted_iota(jnp.int32, (C_in, L), 1)
        xm1 = jnp.where(col == 0, 0.0, pltpu.roll(x, 1, axis=1))        # x[:, l-1]
        xp1 = jnp.where(col == L - 1, 0.0, pltpu.roll(x, L - 1, axis=1))  # x[:, l+1]

        # Stack the three taps on the sublane axis -> (3*C_in, L) matmul operand.
        xs_ref[0:C_in, :] = xm1
        xs_ref[C_in:2 * C_in, :] = x
        xs_ref[2 * C_in:3 * C_in, :] = xp1

        # One MXU push per batch element: (C_out, 3*C_in) x (3*C_in, L), f32 accumulate.
        y = jnp.dot(w_ref[...], xs_ref[...], preferred_element_type=jnp.float32)
        y_ref[0] = y

        # Per-channel partial BatchNorm statistics for this batch element.
        ssum_ref[0] = jnp.sum(y, axis=-1, keepdims=True)        # (C_out, 1)
        ssq_ref[0] = jnp.sum(y * y, axis=-1, keepdims=True)     # (C_out, 1)

    return kernel


def _make_bn_relu_kernel(N, L):
    """Fused train-mode BatchNorm (batch stats) + ReLU, applied in place on the conv output."""
    inv_m = 1.0 / float(N * L)

    def kernel(y_ref, ssum_ref, ssq_ref, gamma_ref, beta_ref, o_ref):
        # Tiny per-channel reductions over the batch (C_out values; negligible per grid step).
        mean = jnp.sum(ssum_ref[...], axis=0) * inv_m            # (C_out, 1)
        ex2 = jnp.sum(ssq_ref[...], axis=0) * inv_m              # (C_out, 1)
        var = jnp.maximum(ex2 - mean * mean, 0.0)                # biased batch variance (f32)
        scale = gamma_ref[...] * jax.lax.rsqrt(var + _EPS)       # (C_out, 1)
        shift = beta_ref[...] - mean * scale                     # (C_out, 1)
        # Single fused elementwise pass: y*scale + shift, then ReLU.
        o_ref[0] = jnp.maximum(y_ref[0] * scale + shift, 0.0)

    return kernel


def group_conv_block(x, weight, bias, gamma, beta, groups):
    """x: (N, C_in, L) f32; weight: (C_out, C_in//groups, 3); bias/gamma/beta: (C_out,)."""
    N, C_in, L = x.shape
    C_out = weight.shape[0]
    C_in_pg = C_in // groups
    C_out_pg = C_out // groups

    x = x.astype(jnp.float32)

    # Block-diagonal weight (C_out, 3*C_in); column index = k*C_in + ci  (group-major channels,
    # matching PyTorch grouped-conv channel ordering).
    w = weight.astype(jnp.float32).reshape(groups, C_out_pg, C_in_pg, 3)
    eye = jnp.eye(groups, dtype=jnp.float32)
    w_full = eye[:, None, :, None, None] * w[:, :, None, :, :]   # (g, Cop, g, Cip, 3)
    w_bd = (w_full.reshape(C_out, C_in, 3)
                  .transpose(0, 2, 1)
                  .reshape(C_out, 3 * C_in))

    g2 = gamma.reshape(C_out, 1).astype(jnp.float32)
    be2 = beta.reshape(C_out, 1).astype(jnp.float32)
    # Conv bias is intentionally dropped: a per-channel constant cancels exactly in
    # train-mode BatchNorm (y - mean).  (Would only matter for running-stat updates,
    # which are not modeled here.)
    del bias

    # ---- kernel 1: grouped conv (block-diag matmul) + per-batch BN statistics ----
    conv_kernel = _make_conv_kernel(C_in, L)
    y, ssum, ssq = pl.pallas_call(
        conv_kernel,
        out_shape=(jax.ShapeDtypeStruct((N, C_out, L), jnp.float32),
                   jax.ShapeDtypeStruct((N, C_out, 1), jnp.float32),
                   jax.ShapeDtypeStruct((N, C_out, 1), jnp.float32)),
        grid=(N,),
        in_specs=[
            pl.BlockSpec((1, C_in, L), lambda n: (n, 0, 0)),
            pl.BlockSpec((C_out, 3 * C_in), lambda n: (0, 0)),
        ],
        out_specs=(
            pl.BlockSpec((1, C_out, L), lambda n: (n, 0, 0)),
            pl.BlockSpec((1, C_out, 1), lambda n: (n, 0, 0)),
            pl.BlockSpec((1, C_out, 1), lambda n: (n, 0, 0)),
        ),
        scratch_shapes=[pltpu.VMEM((3 * C_in, L), jnp.float32)],
        compiler_params=pltpu.CompilerParams(dimension_semantics=("parallel",)),
    )(x, w_bd)

    # ---- kernel 2: fused BatchNorm (batch stats) + ReLU, normalizing y in place ----
    bn_kernel = _make_bn_relu_kernel(N, L)
    out = pl.pallas_call(
        bn_kernel,
        out_shape=jax.ShapeDtypeStruct((N, C_out, L), jnp.float32),
        grid=(N,),
        in_specs=[
            pl.BlockSpec((1, C_out, L), lambda n: (n, 0, 0)),
            pl.BlockSpec((N, C_out, 1), lambda n: (0, 0, 0)),
            pl.BlockSpec((N, C_out, 1), lambda n: (0, 0, 0)),
            pl.BlockSpec((C_out, 1), lambda n: (0, 0)),
            pl.BlockSpec((C_out, 1), lambda n: (0, 0)),
        ],
        out_specs=pl.BlockSpec((1, C_out, L), lambda n: (n, 0, 0)),
        input_output_aliases={0: 0},   # reuse the conv-output HBM buffer for the result
        compiler_params=pltpu.CompilerParams(dimension_semantics=("parallel",)),
    )(y, ssum, ssq, g2, be2)
    return out


def _reference(x, weight, bias, gamma, beta, groups):
    y = jax.lax.conv_general_dilated(
        x, weight, window_strides=(1,), padding="SAME",
        dimension_numbers=("NCH", "OIH", "NCH"),
        feature_group_count=groups)
    y = y + bias[None, :, None]
    mean = jnp.mean(y, axis=(0, 2), keepdims=True)
    var = jnp.mean((y - mean) ** 2, axis=(0, 2), keepdims=True)
    yn = (y - mean) / jnp.sqrt(var + _EPS) * gamma[None, :, None] + beta[None, :, None]
    return jnp.maximum(yn, 0.0)


if __name__ == "__main__":
    # Small shapes consistent with the module: N=2, in_channels=4, out_channels=8,
    # groups=2, sequence length L=16.
    N, C_in, C_out, L, groups = 2, 4, 8, 16, 2
    C_in_pg = C_in // groups

    key = jax.random.PRNGKey(0)
    kx, kw, kb, kg, kbeta = jax.random.split(key, 5)

    x = jax.random.normal(kx, (N, C_in, L), dtype=jnp.float32)
    weight = 0.3 * jax.random.normal(kw, (C_out, C_in_pg, 3), dtype=jnp.float32)
    bias = 0.1 * jax.random.normal(kb, (C_out,), dtype=jnp.float32)
    gamma = 1.0 + 0.05 * jax.random.normal(kg, (C_out,), dtype=jnp.float32)
    beta = 0.05 * jax.random.normal(kbeta, (C_out,), dtype=jnp.float32)
    # TODO(synk): nn.Dropout branch is omitted (dropout=False default); BN running-stat
    #             updates are not modeled (forward output uses batch stats, as in train()).

    out = group_conv_block(x, weight, bias, gamma, beta, groups)
    out = jax.block_until_ready(out)

    ref = _reference(x, weight, bias, gamma, beta, groups)
    np.testing.assert_allclose(np.asarray(out), np.asarray(ref), atol=1e-4, rtol=1e-4)

    print("KERNEL_OK")
</pallas_src>

<mosaic_0001>
module attributes {stable_mosaic.version = 11 : i64} {
  func.func @kernel(%arg0: i32, %arg1: memref<1x4x16xf32, #tpu.memory_space<vmem>>, %arg2: memref<8x12xf32, #tpu.memory_space<vmem>>, %arg3: memref<1x8x16xf32, #tpu.memory_space<vmem>>, %arg4: memref<1x8x1xf32, #tpu.memory_space<vmem>>, %arg5: memref<1x8x1xf32, #tpu.memory_space<vmem>>, %arg6: memref<12x16xf32, #tpu.memory_space<vmem>>) attributes {dimension_semantics = [#tpu.dimension_semantics<parallel>], iteration_bounds = array<i64: 2>, scalar_prefetch = 0 : i64, scratch_operands = 1 : i64, tpu.core_type = #tpu.core_type<tc>, window_params = [{transform_indices = @transform_0, window_bounds = array<i64: 1, 4, 16>}, {pipeline_mode = #tpu.pipeline_mode<synchronous>, transform_indices = @transform_1, window_bounds = array<i64: 8, 12>}, {transform_indices = @transform_2, window_bounds = array<i64: 1, 8, 16>}, {transform_indices = @transform_3, window_bounds = array<i64: 1, 8, 1>}, {transform_indices = @transform_4, window_bounds = array<i64: 1, 8, 1>}]} {
    %c0 = arith.constant 0 : index
    %c0_0 = arith.constant 0 : index
    %c0_1 = arith.constant 0 : index
    %0 = vector.load %arg1[%c0, %c0_0, %c0_1] : memref<1x4x16xf32, #tpu.memory_space<vmem>>, vector<1x4x16xf32>
    %1 = vector.shape_cast %0 : vector<1x4x16xf32> to vector<4x16xf32>
    %2 = tpu.iota {dimensions = array<i32: 1>} : vector<4x16xi32>
    %c0_i32 = arith.constant 0 : i32
    %3 = vector.broadcast %c0_i32 : i32 to vector<4x16xi32>
    %4 = arith.cmpi eq, %2, %3 : vector<4x16xi32>
    %c1_i32 = arith.constant 1 : i32
    %5 = tpu.dynamic_rotate %1 by %c1_i32 dim 1 : vector<4x16xf32>, i32 -> vector<4x16xf32>
    %cst = arith.constant 0.000000e+00 : f32
    %6 = vector.broadcast %cst : f32 to vector<4x16xf32>
    %7 = arith.select %4, %6, %5 : vector<4x16xi1>, vector<4x16xf32>
    %c15_i32 = arith.constant 15 : i32
    %8 = vector.broadcast %c15_i32 : i32 to vector<4x16xi32>
    %9 = arith.cmpi eq, %2, %8 : vector<4x16xi32>
    %c15_i32_2 = arith.constant 15 : i32
    %10 = tpu.dynamic_rotate %1 by %c15_i32_2 dim 1 : vector<4x16xf32>, i32 -> vector<4x16xf32>
    %cst_3 = arith.constant 0.000000e+00 : f32
    %11 = vector.broadcast %cst_3 : f32 to vector<4x16xf32>
    %12 = arith.select %9, %11, %10 : vector<4x16xi1>, vector<4x16xf32>
    %c0_4 = arith.constant 0 : index
    %c0_5 = arith.constant 0 : index
    %13 = vector.load %arg6[%c0_4, %c0_5] : memref<12x16xf32, #tpu.memory_space<vmem>>, vector<4x16xf32>
    tpu.vector_store %arg6[%c0_4, %c0_5], %7 {strides = array<i32>} : memref<12x16xf32, #tpu.memory_space<vmem>>, vector<4x16xf32>,
    %c4 = arith.constant 4 : index
    %c0_6 = arith.constant 0 : index
    %14 = vector.load %arg6[%c4, %c0_6] : memref<12x16xf32, #tpu.memory_space<vmem>>, vector<4x16xf32>
    tpu.vector_store %arg6[%c4, %c0_6], %1 {strides = array<i32>} : memref<12x16xf32, #tpu.memory_space<vmem>>, vector<4x16xf32>,
    %c8 = arith.constant 8 : index
    %c0_7 = arith.constant 0 : index
    %15 = vector.load %arg6[%c8, %c0_7] : memref<12x16xf32, #tpu.memory_space<vmem>>, vector<4x16xf32>
    tpu.vector_store %arg6[%c8, %c0_7], %12 {strides = array<i32>} : memref<12x16xf32, #tpu.memory_space<vmem>>, vector<4x16xf32>,
    %c0_8 = arith.constant 0 : index
    %c0_9 = arith.constant 0 : index
    %16 = vector.load %arg2[%c0_8, %c0_9] : memref<8x12xf32, #tpu.memory_space<vmem>>, vector<8x12xf32>
    %c0_10 = arith.constant 0 : index
    %c0_11 = arith.constant 0 : index
    %17 = vector.load %arg6[%c0_10, %c0_11] : memref<12x16xf32, #tpu.memory_space<vmem>>, vector<12x16xf32>
    %cst_12 = arith.constant dense<0.000000e+00> : vector<8x16xf32>
    %18 = tpu.matmul %16, %17, %cst_12 {dimension_numbers = #tpu.dot_dimension_numbers<[1], [0], [0], [1], [0, 0, 1, 1], [], []>} : vector<8x12xf32>, vector<12x16xf32>, vector<8x16xf32> -> vector<8x16xf32>
    %c0_13 = arith.constant 0 : index
    %c0_14 = arith.constant 0 : index
    %c0_15 = arith.constant 0 : index
    %19 = vector.load %arg3[%c0_13, %c0_14, %c0_15] : memref<1x8x16xf32, #tpu.memory_space<vmem>>, vector<1x8x16xf32>
    %20 = vector.shape_cast %19 : vector<1x8x16xf32> to vector<8x16xf32>
    %21 = vector.shape_cast %18 : vector<8x16xf32> to vector<1x8x16xf32>
    tpu.vector_store %arg3[%c0_13, %c0_14, %c0_15], %21 {strides = array<i32>} : memref<1x8x16xf32, #tpu.memory_space<vmem>>, vector<1x8x16xf32>,
    %cst_16 = arith.constant dense<0.000000e+00> : vector<8xf32>
    %22 = vector.multi_reduction <add>, %18, %cst_16 [1] : vector<8x16xf32> to vector<8xf32>
    %23 = vector.shape_cast %22 : vector<8xf32> to vector<8x1xf32>
    %c0_17 = arith.constant 0 : index
    %c0_18 = arith.constant 0 : index
    %c0_19 = arith.constant 0 : index
    %24 = vector.load %arg4[%c0_17, %c0_18, %c0_19] : memref<1x8x1xf32, #tpu.memory_space<vmem>>, vector<1x8x1xf32>
    %25 = vector.shape_cast %24 : vector<1x8x1xf32> to vector<8x1xf32>
    %26 = vector.shape_cast %23 : vector<8x1xf32> to vector<1x8x1xf32>
    tpu.vector_store %arg4[%c0_17, %c0_18, %c0_19], %26 {strides = array<i32>} : memref<1x8x1xf32, #tpu.memory_space<vmem>>, vector<1x8x1xf32>,
    %27 = arith.mulf %18, %18 : vector<8x16xf32>
    %cst_20 = arith.constant dense<0.000000e+00> : vector<8xf32>
    %28 = vector.multi_reduction <add>, %27, %cst_20 [1] : vector<8x16xf32> to vector<8xf32>
    %29 = vector.shape_cast %28 : vector<8xf32> to vector<8x1xf32>
    %c0_21 = arith.constant 0 : index
    %c0_22 = arith.constant 0 : index
    %c0_23 = arith.constant 0 : index
    %30 = vector.load %arg5[%c0_21, %c0_22, %c0_23] : memref<1x8x1xf32, #tpu.memory_space<vmem>>, vector<1x8x1xf32>
    %31 = vector.shape_cast %30 : vector<1x8x1xf32> to vector<8x1xf32>
    %32 = vector.shape_cast %29 : vector<8x1xf32> to vector<1x8x1xf32>
    tpu.vector_store %arg5[%c0_21, %c0_22, %c0_23], %32 {strides = array<i32>} : memref<1x8x1xf32, #tpu.memory_space<vmem>>, vector<1x8x1xf32>,
    return
  }
  func.func @transform_0(%arg0: i32) -> (i32, i32, i32) {
    %c0_i32 = arith.constant 0 : i32
    %c0_i32_0 = arith.constant 0 : i32
    %c0_i32_1 = arith.constant 0 : i32
    return %arg0, %c0_i32, %c0_i32_0 : i32, i32, i32
  }
  func.func @transform_1(%arg0: i32) -> (i32, i32) {
    %c0_i32 = arith.constant 0 : i32
    %c0_i32_0 = arith.constant 0 : i32
    %c0_i32_1 = arith.constant 0 : i32
    return %c0_i32, %c0_i32_0 : i32, i32
  }
  func.func @transform_2(%arg0: i32) -> (i32, i32, i32) {
    %c0_i32 = arith.constant 0 : i32
    %c0_i32_0 = arith.constant 0 : i32
    %c0_i32_1 = arith.constant 0 : i32
    return %arg0, %c0_i32, %c0_i32_0 : i32, i32, i32
  }
  func.func @transform_3(%arg0: i32) -> (i32, i32, i32) {
    %c0_i32 = arith.constant 0 : i32
    %c0_i32_0 = arith.constant 0 : i32
    %c0_i32_1 = arith.constant 0 : i32
    return %arg0, %c0_i32, %c0_i32_0 : i32, i32, i32
  }
  func.func @transform_4(%arg0: i32) -> (i32, i32, i32) {
    %c0_i32 = arith.constant 0 : i32
    %c0_i32_0 = arith.constant 0 : i32
    %c0_i32_1 = arith.constant 0 : i32
    return %arg0, %c0_i32, %c0_i32_0 : i32, i32, i32
  }
}

</mosaic_0001>

<llo_original>
// kernel: tpu_custom_call.1
$region0: #{tpu_custom_call.1}
  #allocation0 [shape = 'u32[]', space=smem, size = 0x4, offset = 0x4, fixed_abs, tag = 'smem constant byte address 0x4 - core index']
  #allocation1 [shape = 'u32[144,128]{1,0:T(1,128)}', space=vmem, size = 0x12000, scoped, tag = 'internal scratch']
  #allocation2 [shape = 'f32[12,16]{1,0:T(8,128)}', space=vmem, size = 0x2000, scoped, tag = 'scratch operand']
  %s0 = inlined_call_operand.hbm [shape: f32[2,4,16], index: 0, kind: input, shape index: {}]
  %s1 = inlined_call_operand.hbm [shape: f32[8,12], index: 1, kind: input, shape index: {}]
  %s2 = inlined_call_operand.hbm [shape: f32[2,8,16], index: 2, kind: output, shape index: {0}]
  %s3 = inlined_call_operand.vmem [shape: f32[2,8,1], index: 3, kind: output, shape index: {1}]
  %s4 = inlined_call_operand.vmem [shape: f32[2,8,1], index: 4, kind: output, shape index: {2}]
  %5 = xla_tuple %s2, %s3, %s4
  %s6 = sld [smem:[#allocation0]]
  $region65: #{tpu_custom_call.1} parent=0
    _
  %s8 = ssub.s32 1, %s6
  %s9 = scalar_select 0, %s8, %s6
  $region1: #{tpu_custom_call.1} parent=0
    #allocation3 [shape = 'u8[4096]{0}', space=vmem, size = 0x1000, scoped, tag = 'input window, operand 0']
    #allocation4 [shape = 's32[2]{0}', space=sflag, size = 0x8, scoped, tag = 'scoped memory for tpu_custom_call.1']
    #allocation5 [shape = 's32[2]{0}', space=sflag, size = 0x8, scoped, tag = 'scoped memory for tpu_custom_call.1']
    #allocation6 [shape = 'u8[4096]{0}', space=vmem, size = 0x1000, scoped, tag = 'input window, operand 1, single buffered']
    #allocation7 [shape = 's32[1]{0}', space=sflag, size = 0x4, scoped, tag = 'scoped memory for tpu_custom_call.1']
    #allocation8 [shape = 'u8[8192]{0}', space=vmem, size = 0x2000, scoped, tag = 'output window, operand 0']
    %10 = vsyncpa [#allocation4], 0
    %s11 = scalar_lea.sflag [#allocation4], 1
    %12 = vsyncpa %s11, 0
    %13 = vsyncpa [#allocation7], 0
    %14 = vsyncpa [#allocation5], 0
    %s15 = scalar_lea.sflag [#allocation5], 1
    %16 = vsyncpa %s15, 0
    loop: start=0, step=1, limit=4
    $region2: #{tpu_custom_call.1} parent=1 // loop_pre_header
      _
    $region3: #{tpu_custom_call.1} parent=1 // loop_header
      %s18 = sphi 0, %s22
      %p19 = scmp.ge.s32.totalorder %s18, 4
      %s28 = sphi 0, %s30
      %s31 = sphi 0, %s28
      %s32 = sphi 0, %s31
      %s48 = sphi 0, %s32
      %s52 = sphi 0, %s52
      %s54 = sphi 0, %s52
      %s55 = sphi 0, %s54
      %s69 = sphi 0, %s55
      %s75 = sphi 0, %s77
      %s78 = sphi 0, %s75
      %s79 = sphi 0, %s78
      %s95 = sphi 0, %s79
      %s101 = sphi 0, %s103
      %s104 = sphi 0, %s101
      %s105 = sphi 0, %s104
      %s121 = sphi 0, %s105
      %s127 = sphi 0, %s129
      %s130 = sphi 0, %s127
      %s131 = sphi 0, %s130
      %s147 = sphi 0, %s131
    $region4: #{tpu_custom_call.1} parent=1 // loop_header_branch
      %21 = sbr.rel (%p19) target = $region8
    $region5: #{tpu_custom_call.1} parent=1 // loop_body
      %s23 = ssub.s32 %s18, 1
      %s24 = ssub.s32 %s18, 2
      %s25 = sadd.s32 %s18, 1
      %s26 = ssub.s32 %s18, %s25
      %p27 = scmp.eq.s32.totalorder %s26, 0
      %s29 = sadd.s32 %s28, 1
      %s30 = scalar_select %p27, %s28, %s29
      %p33 = pneg %p27
      %p34 = scmp.eq.s32.totalorder %s18, 1
      %p35 = por %p33, %p34
      %p36 = scmp.ne.s32.totalorder %s28, %s31
      %p37 = scmp.eq.s32.totalorder %s18, 0
      %p38 = por %p36, %p37
      %p39 = scmp.ne.s32.totalorder %s28, %s31
      %p40 = scmp.eq.s32.totalorder %s23, 1
      %p41 = por %p39, %p40
      %p42 = scmp.ne.s32.totalorder %s31, %s32
      %p43 = scmp.eq.s32.totalorder %s23, 0
      %p44 = por %p42, %p43
      %p45 = scmp.ne.s32.totalorder %s31, %s32
      %p46 = scmp.eq.s32.totalorder %s24, 1
      %p47 = por %p45, %p46
      %p49 = scmp.ne.s32.totalorder %s32, %s48
      %p50 = scmp.eq.s32.totalorder %s24, 0
      %p51 = por %p49, %p50
      %s53 = sadd.s32 %s52, 1
      %p56 = scmp.eq.s32.totalorder %s18, 1
      %p57 = scmp.ne.s32.totalorder %s52, %s54
      %p58 = scmp.eq.s32.totalorder %s18, 0
      %p59 = por %p57, %p58
      %p60 = scmp.ne.s32.totalorder %s52, %s54
      %p61 = scmp.eq.s32.totalorder %s23, 1
      %p62 = por %p60, %p61
      %p63 = scmp.ne.s32.totalorder %s54, %s55
      %p64 = scmp.eq.s32.totalorder %s23, 0
      %p65 = por %p63, %p64
      %p66 = scmp.ne.s32.totalorder %s54, %s55
      %p67 = scmp.eq.s32.totalorder %s24, 1
      %p68 = por %p66, %p67
      %p70 = scmp.ne.s32.totalorder %s55, %s69
      %p71 = scmp.eq.s32.totalorder %s24, 0
      %p72 = por %p70, %p71
      %s73 = ssub.s32 %s18, %s25
      %p74 = scmp.eq.s32.totalorder %s73, 0
      %s76 = sadd.s32 %s75, 1
      %s77 = scalar_select %p74, %s75, %s76
      %p80 = pneg %p74
      %p81 = scmp.eq.s32.totalorder %s18, 1
      %p82 = por %p80, %p81
      %p83 = scmp.ne.s32.totalorder %s75, %s78
      %p84 = scmp.eq.s32.totalorder %s18, 0
      %p85 = por %p83, %p84
      %p86 = scmp.ne.s32.totalorder %s75, %s78
      %p87 = scmp.eq.s32.totalorder %s23, 1
      %p88 = por %p86, %p87
      %p89 = scmp.ne.s32.totalorder %s78, %s79
      %p90 = scmp.eq.s32.totalorder %s23, 0
      %p91 = por %p89, %p90
      %p92 = scmp.ne.s32.totalorder %s78, %s79
      %p93 = scmp.eq.s32.totalorder %s24, 1
      %p94 = por %p92, %p93
      %p96 = scmp.ne.s32.totalorder %s79, %s95
      %p97 = scmp.eq.s32.totalorder %s24, 0
      %p98 = por %p96, %p97
      %s99 = ssub.s32 %s18, %s25
      %p100 = scmp.eq.s32.totalorder %s99, 0
      %s102 = sadd.s32 %s101, 1
      %s103 = scalar_select %p100, %s101, %s102
      %p106 = pneg %p100
      %p107 = scmp.eq.s32.totalorder %s18, 1
      %p108 = por %p106, %p107
      %p109 = scmp.ne.s32.totalorder %s101, %s104
      %p110 = scmp.eq.s32.totalorder %s18, 0
      %p111 = por %p109, %p110
      %p112 = scmp.ne.s32.totalorder %s101, %s104
      %p113 = scmp.eq.s32.totalorder %s23, 1
      %p114 = por %p112, %p113
      %p115 = scmp.ne.s32.totalorder %s104, %s105
      %p116 = scmp.eq.s32.totalorder %s23, 0
      %p117 = por %p115, %p116
      %p118 = scmp.ne.s32.totalorder %s104, %s105
      %p119 = scmp.eq.s32.totalorder %s24, 1
      %p120 = por %p118, %p119
      %p122 = scmp.ne.s32.totalorder %s105, %s121
      %p123 = scmp.eq.s32.totalorder %s24, 0
      %p124 = por %p122, %p123
      %s125 = ssub.s32 %s18, %s25
      %p126 = scmp.eq.s32.totalorder %s125, 0
      %s128 = sadd.s32 %s127, 1
      %s129 = scalar_select %p126, %s127, %s128
      %p132 = pneg %p126
      %p133 = scmp.eq.s32.totalorder %s18, 1
      %p134 = por %p132, %p133
      %p135 = scmp.ne.s32.totalorder %s127, %s130
      %p136 = scmp.eq.s32.totalorder %s18, 0
      %p137 = por %p135, %p136
      %p138 = scmp.ne.s32.totalorder %s127, %s130
      %p139 = scmp.eq.s32.totalorder %s23, 1
      %p140 = por %p138, %p139
      %p141 = scmp.ne.s32.totalorder %s130, %s131
      %p142 = scmp.eq.s32.totalorder %s23, 0
      %p143 = por %p141, %p142
      %p144 = scmp.ne.s32.totalorder %s130, %s131
      %p145 = scmp.eq.s32.totalorder %s24, 1
      %p146 = por %p144, %p145
      %p148 = scmp.ne.s32.totalorder %s131, %s147
      %p149 = scmp.eq.s32.totalorder %s24, 0
      %p150 = por %p148, %p149
      %p151 = scmp.le.s32.totalorder 1, %s18
      %p152 = scmp.lt.s32.totalorder %s18, 3
      %p153 = pnand %p151, %p152
      %p154 = pneg %p153
      // Predicated region
      $region9: #{tpu_custom_call.1} parent=5 // pred_check
        _
      $region10: #{tpu_custom_call.1} parent=5 // pred_check_branch
        %156 = sbr.rel (%p153) target = $region12
      $region11: #{tpu_custom_call.1} parent=5 // pred_region
        %s157 = ssub.s32 %s18, 1
        // Predicated region
        $region13: #{tpu_custom_call.1} parent=11 // pred_check
          %p158 = pneg %p65
        $region14: #{tpu_custom_call.1} parent=11 // pred_check_branch
          %160 = sbr.rel (%p158) target = $region16
        $region15: #{tpu_custom_call.1} parent=11 // pred_region
          %s162 = ssub.s32 128, 128
          %163 = vsyncadd [#allocation7], %s162
          %s165 = sshll.u32 [#allocation6], 4
          %s166 = int_to_ptr.vmem [resolvable:$true] %s165
          %168 = dma.hbm_to_vmem [thread:$0]  %s1, 128, %s166, [#allocation7]
        $region16: #{tpu_custom_call.1} parent=11 // pred_fallthru
          _
      $region12: #{tpu_custom_call.1} parent=5 // pred_fallthru
        _
      %p169 = scmp.lt.s32.totalorder %s18, 2
      // Predicated region
      $region17: #{tpu_custom_call.1} parent=5 // pred_check
        %p170 = pneg %p169
      $region18: #{tpu_custom_call.1} parent=5 // pred_check_branch
        %172 = sbr.rel (%p170) target = $region20
      $region19: #{tpu_custom_call.1} parent=5 // pred_region
        // Predicated region
        $region21: #{tpu_custom_call.1} parent=19 // pred_check
          %p173 = pneg %p38
        $region22: #{tpu_custom_call.1} parent=19 // pred_check_branch
          %175 = sbr.rel (%p173) target = $region24
        $region23: #{tpu_custom_call.1} parent=19 // pred_region
          %s176 = sand.u32 %s28, 1
          %s177 = scalar_lea.sflag [#allocation4], %s176
          %s178 = sand.u32 %s28, 1
          %s179 = smul.addr %s178, 4
          %s180 = scalar_lea.vmem [#allocation3], %s179
          %s182 = ssub.s32 64, 64
          %183 = vsyncadd %s177, %s182
          %s184 = smul.addr %s18, 64
          %s185 = scalar_lea.hbm %s0, %s184
          %s187 = sshll.u32 %s180, 4
          %s188 = int_to_ptr.vmem [resolvable:$true] %s187
          %190 = dma.hbm_to_vmem [thread:$0]  %s185, 64, %s188, %s177
        $region24: #{tpu_custom_call.1} parent=19 // pred_fallthru
          _
      $region20: #{tpu_custom_call.1} parent=5 // pred_fallthru
        _
      %p191 = scmp.le.s32.totalorder 1, %s18
      %p192 = scmp.lt.s32.totalorder %s18, 3
      %p193 = pnand %p191, %p192
      %p194 = pneg %p193
      // Predicated region
      $region25: #{tpu_custom_call.1} parent=5 // pred_check
        _
      $region26: #{tpu_custom_call.1} parent=5 // pred_check_branch
        %196 = sbr.rel (%p193) target = $region28
      $region27: #{tpu_custom_call.1} parent=5 // pred_region
        %s197 = ssub.s32 %s18, 1
        %s198 = sand.u32 %s31, 1
        %s199 = scalar_lea.sflag [#allocation4], %s198
        %s200 = sand.u32 %s31, 1
        %s201 = smul.addr %s200, 4
        %s202 = scalar_lea.vmem [#allocation3], %s201
        // Predicated region
        $region29: #{tpu_custom_call.1} parent=27 // pred_check
          %p203 = pneg %p44
        $region30: #{tpu_custom_call.1} parent=27 // pred_check_branch
          %205 = sbr.rel (%p203) target = $region32
        $region31: #{tpu_custom_call.1} parent=27 // pred_region
          %206 = dma.done %s199, 64
        $region32: #{tpu_custom_call.1} parent=27 // pred_fallthru
          _
        // Predicated region
        $region33: #{tpu_custom_call.1} parent=27 // pred_check
          %p207 = pneg %p65
        $region34: #{tpu_custom_call.1} parent=27 // pred_check_branch
          %209 = sbr.rel (%p207) target = $region36
        $region35: #{tpu_custom_call.1} parent=27 // pred_region
          %210 = dma.done [#allocation7], 128
        $region36: #{tpu_custom_call.1} parent=27 // pred_fallthru
          _
        %s211 = sand.u32 %s31, 1
        %s212 = scalar_lea.sflag [#allocation4], %s211
        %s213 = sand.u32 %s31, 1
        %s214 = smul.addr %s213, 4
        %s215 = scalar_lea.vmem [#allocation3], %s214
        %p216 = pneg %p44
        %p217 = pneg %p41
        %p218 = pneg %p65
        %p219 = pneg %p62
        %p220 = pneg %p91
        %p221 = pneg %p88
        %s222 = sand.u32 %s78, 1
        %s223 = scalar_lea.sflag [#allocation5], %s222
        %s224 = sand.u32 %s78, 1
        %s225 = smul.addr %s224, 8
        %s226 = scalar_lea.vmem [#allocation8], %s225
        %p227 = pneg %p117
        %p228 = pneg %p114
        %p229 = scmp.lt.s32.totalorder %s23, 1
        %s230 = scalar_select %p229, %s23, 1
        %s231 = smul.addr %s230, 8
        %s232 = scalar_lea.vmem %s3, %s231
        %p233 = pneg %p143
        %p234 = pneg %p140
        %p235 = scmp.lt.s32.totalorder %s23, 1
        %s236 = scalar_select %p235, %s23, 1
        %s237 = smul.addr %s236, 8
        %s238 = scalar_lea.vmem %s4, %s237
        %p239 = scmp.lt.s32.totalorder %s23, 1
        %s240 = scalar_select %p239, %s23, 1
        %s241 = smul.addr %s240, 8
        %s242 = scalar_lea.vmem %s3, %s241
        %p243 = scmp.lt.s32.totalorder %s23, 1
        %s244 = scalar_select %p243, %s23, 1
        %s245 = smul.addr %s244, 8
        %s246 = scalar_lea.vmem %s4, %s245
        %v247 = vld [vmem:[%s202] sm:$0xf]
        %v248 = vlaneseq
        %v249 = vand.u32 %v248, 127
        %vm250 = vcmp.eq.s32.totalorder %v249, 0
        %vm251 = vcmask 1047680
        %252 = vrot.lane.b32.xlu0 %v247, 16
        %v253 = vpop.permute.xlu0 %252
        %v254 = vsel %vm251, %v253, %v247
        %255 = vrot.lane.b32.xlu0 %v254, 16
        %v256 = vpop.permute.xlu0 %255
        %v257 = vsel %vm251, %v256, %v247
        %259 = vrot.lane.b32.xlu0 %v257, 113
        %v260 = vpop.permute.xlu0 %259
        %v262 = vsel %vm250, 0.0, %v260
        %vm263 = vcmp.eq.s32.totalorder %v249, 15
        %264 = vrot.lane.b32.xlu0 %v257, 127
        %v265 = vpop.permute.xlu0 %264
        %v267 = vsel %vm263, 0.0, %v265
        %vm268 = vcmask 125952
        %269 = vst.msk [vmem:[#allocation2] sm:$0xf] %vm268, %v262
        %270 = vst.msk [vmem:[#allocation2 + $0x4] sm:$0xf] %vm268, %v247
        %271 = vst.msk [vmem:[#allocation2 + $0x8] sm:$0xf] %vm268, %v267
        %v272 = vld [vmem:[#allocation6] sm:$0xff]
        %v273 = vld [vmem:[#allocation2] sm:$0xff]
        %v274 = vld [vmem:[#allocation2 + $0x8] sm:$0xf]
        %vm275 = vcmask 97280
        %v277 = vsel %vm275, %v272, 0
        %vm279 = vcmask 1043456
        %v281 = vsel %vm279, %v274, 0
        %283 = vmatprep.subr.mxu0 0.0
        %284 = vmatpush1.msra.mxu0 %v273
        %285 = vmatprep.subr.mxu0 0.0
        %286 = vmatpush1.msra.mxu0 %v281
        %287 = vmatprep.subr.mxu0 0.0
        %288 = vmatpush1.msra.mxu0 0.0
        %289 = vmatprep.subr.mxu0 0.0
        %290 = vmatpush1.msra.mxu0 0.0
        %291 = vmatprep.subr.mxu0 0.0
        %292 = vmatpush1.msra.mxu0 0.0
        %293 = vmatprep.subr.mxu0 0.0
        %294 = vmatpush1.msra.mxu0 0.0
        %295 = vmatprep.subr.mxu0 0.0
        %296 = vmatpush1.msra.mxu0 0.0
        %297 = vmatprep.subr.mxu0 0.0
        %298 = vmatpush1.msra.mxu0 0.0
        %299 = vmatprep.subr.mxu0 0.0
        %300 = vmatpush1.msra.mxu0 0.0
        %301 = vmatprep.subr.mxu0 0.0
        %302 = vmatpush1.msra.mxu0 0.0
        %303 = vmatprep.subr.mxu0 0.0
        %304 = vmatpush1.msra.mxu0 0.0
        %305 = vmatprep.subr.mxu0 0.0
        %306 = vmatpush1.msra.mxu0 0.0
        %307 = vmatprep.subr.mxu0 0.0
        %308 = vmatpush1.msra.mxu0 0.0
        %309 = vmatprep.subr.mxu0 0.0
        %310 = vmatpush1.msra.mxu0 0.0
        %311 = vmatprep.subr.mxu0 0.0
        %312 = vmatpush1.msra.mxu0 0.0
        %313 = vmatprep.subr.mxu0 0.0
        %314 = vmatpush1.msra.mxu0 0.0
        %315 = vmatprep.subr.mxu0 0.0
        %316 = vmatpush1.msra.mxu0 0.0
        %317 = vmatprep.subr.mxu0 0.0
        %318 = vmatpush1.msra.mxu0 0.0
        %319 = vmatprep.subr.mxu0 0.0
        %320 = vmatpush1.msra.mxu0 0.0
        %321 = vmatprep.subr.mxu0 0.0
        %322 = vmatpush1.msra.mxu0 0.0
        %323 = vmatprep.subr.mxu0 0.0
        %324 = vmatpush1.msra.mxu0 0.0
        %325 = vmatprep.subr.mxu0 0.0
        %326 = vmatpush1.msra.mxu0 0.0
        %327 = vmatprep.subr.mxu0 0.0
        %328 = vmatpush1.msra.mxu0 0.0
        %329 = vmatprep.subr.mxu0 0.0
        %330 = vmatpush1.msra.mxu0 0.0
        %331 = vmatprep.subr.mxu0 0.0
        %332 = vmatpush1.msra.mxu0 0.0
        %333 = vmatprep.subr.mxu0 0.0
        %334 = vmatpush1.msra.mxu0 0.0
        %335 = vmatprep.subr.mxu0 0.0
        %336 = vmatpush1.msra.mxu0 0.0
        %337 = vmatprep.subr.mxu0 0.0
        %338 = vmatpush1.msra.mxu0 0.0
        %339 = vmatprep.subr.mxu0 0.0
        %340 = vmatpush1.msra.mxu0 0.0
        %341 = vmatprep.subr.mxu0 0.0
        %342 = vmatpush1.msra.mxu0 0.0
        %343 = vmatprep.subr.mxu0 0.0
        %344 = vmatpush1.msra.mxu0 0.0
        %345 = vmatprep.subr.mxu0 0.0
        %346 = vmatpush1.msra.mxu0 0.0
        %347 = vmatprep.mubr.f32.mxu0 0.0
        %348 = vmatmul.mubr.f32.gmra.mrb[0].mxu0 %v277
        %v349 = vpop.f32.mrb[0].mxu0
        %v350 = vadd.f32 0.0, %v349
        %v351 = vpop.f32.mrb[0].mxu0
        %352 = vdwg.mxu0
        %vm353 = vcmask 130048
        %354 = vst.msk [vmem:[%s226] sm:$0xff] %vm353, %v350
        %v355 = vsel %vm353, %v350, 0.0
        %356 = vadd.xlane.f32.xlu0 %v355
        %v357 = vpop.xlane.xlu0 %356
        %vm358 = vcmask 7168
        %359 = vst.msk [vmem:[%s242] sm:$0xff] %vm358, %v357
        %v360 = vmul.f32 %v350, %v350
        %v361 = vsel %vm353, %v360, 0.0
        %362 = vadd.xlane.f32.xlu0 %v361
        %v363 = vpop.xlane.xlu0 %362
        %364 = vst.msk [vmem:[%s246] sm:$0xff] %vm358, %v363
        %s365 = sand.u32 %s78, 1
        %s366 = scalar_lea.sflag [#allocation5], %s365
        %s367 = sand.u32 %s78, 1
        %s368 = smul.addr %s367, 8
        %s369 = scalar_lea.vmem [#allocation8], %s368
        %p370 = scmp.lt.s32.totalorder %s23, 1
        %s371 = scalar_select %p370, %s23, 1
        %s372 = smul.addr %s371, 8
        %s373 = scalar_lea.vmem %s3, %s372
        %p374 = scmp.lt.s32.totalorder %s23, 1
        %s375 = scalar_select %p374, %s23, 1
        %s376 = smul.addr %s375, 8
        %s377 = scalar_lea.vmem %s4, %s376
        // Predicated region
        $region37: #{tpu_custom_call.1} parent=27 // pred_check
          %p378 = pneg %p88
        $region38: #{tpu_custom_call.1} parent=27 // pred_check_branch
          %380 = sbr.rel (%p378) target = $region40
        $region39: #{tpu_custom_call.1} parent=27 // pred_region
          %s382 = ssub.s32 128, 128
          %383 = vsyncadd %s366, %s382
          %s384 = smul.addr %s23, 128
          %s385 = scalar_lea.hbm %s2, %s384
          %s387 = sshll.u32 %s369, 4
          %s388 = int_to_ptr.vmem [resolvable:$true] %s387
          %390 = dma.vmem_to_hbm [thread:$0]  %s388, 128, %s385, %s366
        $region40: #{tpu_custom_call.1} parent=27 // pred_fallthru
          _
        // Predicated region
        $region41: #{tpu_custom_call.1} parent=27 // pred_check
          %p391 = pneg %p114
        $region42: #{tpu_custom_call.1} parent=27 // pred_check_branch
          %393 = sbr.rel (%p391) target = $region44
        $region43: #{tpu_custom_call.1} parent=27 // pred_region
          _
        $region44: #{tpu_custom_call.1} parent=27 // pred_fallthru
          _
        // Predicated region
        $region45: #{tpu_custom_call.1} parent=27 // pred_check
          %p394 = pneg %p140
        $region46: #{tpu_custom_call.1} parent=27 // pred_check_branch
          %396 = sbr.rel (%p394) target = $region48
        $region47: #{tpu_custom_call.1} parent=27 // pred_region
          _
        $region48: #{tpu_custom_call.1} parent=27 // pred_fallthru
          _
      $region28: #{tpu_custom_call.1} parent=5 // pred_fallthru
        _
      %p397 = scmp.le.s32.totalorder 2, %s18
      // Predicated region
      $region49: #{tpu_custom_call.1} parent=5 // pred_check
        %p398 = pneg %p397
      $region50: #{tpu_custom_call.1} parent=5 // pred_check_branch
        %400 = sbr.rel (%p398) target = $region52
      $region51: #{tpu_custom_call.1} parent=5 // pred_region
        %s401 = ssub.s32 %s18, 2
        // Predicated region
        $region53: #{tpu_custom_call.1} parent=51 // pred_check
          %p402 = pneg %p94
        $region54: #{tpu_custom_call.1} parent=51 // pred_check_branch
          %404 = sbr.rel (%p402) target = $region56
        $region55: #{tpu_custom_call.1} parent=51 // pred_region
          %s405 = sand.u32 %s79, 1
          %s406 = scalar_lea.sflag [#allocation5], %s405
          %s407 = sand.u32 %s79, 1
          %s408 = smul.addr %s407, 8
          %s409 = scalar_lea.vmem [#allocation8], %s408
          %410 = dma.done %s406, 128
        $region56: #{tpu_custom_call.1} parent=51 // pred_fallthru
          _
        // Predicated region
        $region57: #{tpu_custom_call.1} parent=51 // pred_check
          %p411 = pneg %p120
        $region58: #{tpu_custom_call.1} parent=51 // pred_check_branch
          %413 = sbr.rel (%p411) target = $region60
        $region59: #{tpu_custom_call.1} parent=51 // pred_region
          %p414 = scmp.lt.s32.totalorder %s24, 1
          %s415 = scalar_select %p414, %s24, 1
          %s416 = smul.addr %s415, 8
          %s417 = scalar_lea.vmem %s3, %s416
        $region60: #{tpu_custom_call.1} parent=51 // pred_fallthru
          _
        // Predicated region
        $region61: #{tpu_custom_call.1} parent=51 // pred_check
          %p418 = pneg %p146
        $region62: #{tpu_custom_call.1} parent=51 // pred_check_branch
          %420 = sbr.rel (%p418) target = $region64
        $region63: #{tpu_custom_call.1} parent=51 // pred_region
          %p421 = scmp.lt.s32.totalorder %s24, 1
          %s422 = scalar_select %p421, %s24, 1
          %s423 = smul.addr %s422, 8
          %s424 = scalar_lea.vmem %s4, %s423
        $region64: #{tpu_custom_call.1} parent=51 // pred_fallthru
          _
      $region52: #{tpu_custom_call.1} parent=5 // pred_fallthru
        _
    $region6: #{tpu_custom_call.1} parent=1 // loop_footer
      %s22 = sadd.s32 1, %s18
    $region7: #{tpu_custom_call.1} parent=1 // loop_footer_branch
      %17 = sbr.rel target = $region3
    $region8: #{tpu_custom_call.1} parent=1 // loop_exit
      _
    %425 = vsyncpa [#allocation4], 1
    %s426 = scalar_lea.sflag [#allocation4], 1
    %427 = vsyncpa %s426, 1
    %428 = vsyncpa [#allocation7], 1
    %429 = vsyncpa [#allocation5], 1
    %s430 = scalar_lea.sflag [#allocation5], 1
    %431 = vsyncpa %s430, 1

</llo_original>
